<compile_context>
chip_gen: v5e
topology: v5e:2x2
jax: 0.10.0
libtpu: 0.0.40
codegen_flags: <defaults>
</compile_context>

<pallas_src>
import functools

import jax
import jax.numpy as jnp
from jax.experimental import pallas as pl
from jax.experimental.pallas import tpu as pltpu


def _vmem_cap_bytes():
    """Generation-aware usable scoped-VMEM budget (with ~25% headroom)."""
    phys = None
    try:
        info = pltpu.get_tpu_info()
        phys = getattr(info, "vmem_capacity_bytes", None)
    except Exception:
        phys = None
    if not phys:
        phys = 64 << 20  # conservative default (v7x = 64 MiB/TC; v5e/v6e = 128 MiB)
    return int(phys) * 3 // 4


def _excite(y, w1_ref, b1_ref, w2_ref, b2_ref, use_mxu):
    """Excitation MLP: (NB, C) pooled mean -> (NB, C) sigmoid gate, f32."""
    w1 = w1_ref[...]  # (Bc, C) f32, pre-scaled by 1/HW in the wrapper
    w2 = w2_ref[...]  # (C, Bc) f32
    if use_mxu:
        h = jax.lax.dot_general(y, w1, (((1,), (1,)), ((), ())),
                                preferred_element_type=jnp.float32)
    else:
        # Tiny C: VPU broadcast-multiply + lane reduce beats a degenerate matmul.
        h = jnp.sum(y[:, None, :] * w1[None, :, :], axis=-1)
    h = jnp.maximum(h + b1_ref[...], 0.0)                                # (NB, Bc)
    if use_mxu:
        s = jax.lax.dot_general(h, w2, (((1,), (1,)), ((), ())),
                                preferred_element_type=jnp.float32)
    else:
        s = jnp.sum(h[:, None, :] * w2[None, :, :], axis=-1)
    return jax.nn.sigmoid(s + b2_ref[...])                               # (NB, C)


def _se_fused_kernel(x_ref, w1_ref, b1_ref, w2_ref, b2_ref, o_ref, *, use_mxu):
    # Squeeze: global average pool.  w1 carries the 1/HW factor, so a plain sum
    # over the spatial axis is the correct MLP input.
    y = jnp.sum(x_ref[...], axis=-1, dtype=jnp.float32)                  # (NB, C)
    s = _excite(y, w1_ref, b1_ref, w2_ref, b2_ref, use_mxu)              # (NB, C)
    # Scale: re-index x_ref here (short live range across the reduce + MLP);
    # gate is cast to the I/O dtype so the big multiply stays in input precision.
    o_ref[...] = x_ref[...] * s[:, :, None].astype(o_ref.dtype)


def _se_pool_gate_kernel(x_ref, w1_ref, b1_ref, w2_ref, b2_ref, s_ref, acc_ref,
                         *, hw_real, hw_tile, mask_tail, use_mxu):
    h_i = pl.program_id(1)

    @pl.when(h_i == 0)
    def _init():
        acc_ref[...] = jnp.zeros_like(acc_ref)

    x = x_ref[...].astype(jnp.float32)                                   # (1, C, hw_tile)
    if mask_tail:
        # The last HW block may read past the end of the array (garbage lanes);
        # zero them so the pooled sum is exact.
        lane = jax.lax.broadcasted_iota(jnp.int32, x.shape, 2) + h_i * hw_tile
        x = jnp.where(lane < hw_real, x, 0.0)
    acc_ref[...] += jnp.sum(x, axis=-1)                                  # (1, C)

    @pl.when(h_i == pl.num_programs(1) - 1)
    def _finalize():
        s = _excite(acc_ref[...], w1_ref, b1_ref, w2_ref, b2_ref, use_mxu)
        s_ref[...] = s[:, :, None]                                       # (1, C, 1)


def _se_scale_kernel(x_ref, s_ref, o_ref):
    o_ref[...] = x_ref[...] * s_ref[...].astype(o_ref.dtype)             # (1,C,hw)*(1,C,1)


def se_layer(x, w1, b1, w2, b2, *, tile_target_bytes=4 * 1024 * 1024,
             force_two_pass=False, hw_tile=None):
    """SELayer forward.  x: (N, C, H, W); w1: (Bc, C); b1: (Bc,); w2: (C, Bc); b2: (C,)."""
    N, C, H, W = x.shape
    Bc = w1.shape[0]
    HW = H * W
    itemsize = jnp.dtype(x.dtype).itemsize

    # (N, C, H, W) -> (N, C, HW): free contiguous reshape, no pad, no HBM copy.
    x_flat = x.reshape(N, C, HW)

    # Pre-cast weights to f32 and fold the 1/HW pooling divisor into w1.
    w1f = w1.astype(jnp.float32) * (1.0 / HW)
    w2f = w2.astype(jnp.float32)
    b1f = b1.reshape(1, Bc).astype(jnp.float32)
    b2f = b2.reshape(1, C).astype(jnp.float32)

    use_mxu = C >= 128  # tiny-C excitation stays on the VPU

    per_elem = C * HW * itemsize                        # one (C, HW) slab of x
    weight_bytes = 4 * (2 * Bc * C + Bc + C)            # f32 weights resident in VMEM
    slack = 1 << 20
    vmem_cap = _vmem_cap_bytes()
    budget = vmem_cap - 2 * weight_bytes - slack

    single_pass = not force_two_pass
    NB = 1
    single_buffer_out = False
    if single_pass:
        if budget >= 4 * per_elem:
            NB = max(1, min(N, tile_target_bytes // max(per_elem, 1),
                            budget // (4 * per_elem)))
        elif budget >= 3 * per_elem:
            # Near-ceiling slab: single-buffer the output (3x tile instead of
            # 4x) to stay on the 1R+1W single-pass path.
            NB = 1
            single_buffer_out = True
        else:
            single_pass = False
        if single_pass and N >= 2:
            # Keep the parallel grid length >= 2 so both TensorCores on v7x
            # megacore get work even for small N.
            NB = min(NB, pl.cdiv(N, 2))

    if single_pass:
        # N % NB != 0 is fine: edge blocks read garbage batch rows, but each
        # row's output depends only on its own data and out-of-bounds rows are
        # masked on writeback.  Do NOT add cross-row reductions to this kernel.
        grid = (pl.cdiv(N, NB),)
        buf_mult = 3 if single_buffer_out else 4
        vmem_needed = buf_mult * NB * per_elem + 2 * weight_bytes + slack
        vmem_limit = int(min(max(vmem_needed, 16 << 20), vmem_cap))

        if single_buffer_out:
            out_spec = pl.BlockSpec((NB, C, HW), lambda n: (n, 0, 0),
                                    pipeline_mode=pl.Buffered(1))
        else:
            out_spec = pl.BlockSpec((NB, C, HW), lambda n: (n, 0, 0))

        cost = pl.CostEstimate(
            flops=int(2 * N * C * HW + 4 * N * C * Bc),
            transcendentals=int(N * C),
            bytes_accessed=int(2 * N * C * HW * itemsize + weight_bytes),
        )
        out = pl.pallas_call(
            functools.partial(_se_fused_kernel, use_mxu=use_mxu),
            out_shape=jax.ShapeDtypeStruct((N, C, HW), x.dtype),
            grid_spec=pltpu.PrefetchScalarGridSpec(
                num_scalar_prefetch=0,
                grid=grid,
                in_specs=[
                    pl.BlockSpec((NB, C, HW), lambda n: (n, 0, 0)),
                    pl.BlockSpec((Bc, C), lambda n: (0, 0)),
                    pl.BlockSpec((1, Bc), lambda n: (0, 0)),
                    pl.BlockSpec((C, Bc), lambda n: (0, 0)),
                    pl.BlockSpec((1, C), lambda n: (0, 0)),
                ],
                out_specs=out_spec,
            ),
            compiler_params=pltpu.CompilerParams(
                dimension_semantics=("parallel",),
                vmem_limit_bytes=vmem_limit,
            ),
            cost_estimate=cost,
        )(x_flat, w1f, b1f, w2f, b2f)
        return out.reshape(N, C, H, W)

    # ---- two-pass fallback: the (C, HW) slab cannot stay VMEM-resident ------
    if hw_tile is None:
        hwt = max(128, (max(budget, 4 * 128 * C * itemsize)
                        // (4 * C * itemsize)) // 128 * 128)
    else:
        hwt = max(128, (hw_tile // 128) * 128)
    hwt = min(hwt, HW)
    if hwt != HW:
        hwt = (hwt // 128) * 128  # sub-extent last-dim blocks must be lane aligned
    n_hw = pl.cdiv(HW, hwt)
    mask_tail = (HW % hwt) != 0

    vmem_needed = 4 * C * hwt * itemsize + 2 * weight_bytes + slack
    vmem_limit = int(min(max(vmem_needed, 16 << 20), vmem_cap))

    # Pass 1: HW-tiled pooled-sum accumulation + excitation MLP -> gate (N,C,1).
    gate = pl.pallas_call(
        functools.partial(_se_pool_gate_kernel, hw_real=HW, hw_tile=hwt,
                          mask_tail=mask_tail, use_mxu=use_mxu),
        out_shape=jax.ShapeDtypeStruct((N, C, 1), jnp.float32),
        grid_spec=pltpu.PrefetchScalarGridSpec(
            num_scalar_prefetch=0,
            grid=(N, n_hw),
            in_specs=[
                pl.BlockSpec((1, C, hwt), lambda n, h: (n, 0, h)),
                pl.BlockSpec((Bc, C), lambda n, h: (0, 0)),
                pl.BlockSpec((1, Bc), lambda n, h: (0, 0)),
                pl.BlockSpec((C, Bc), lambda n, h: (0, 0)),
                pl.BlockSpec((1, C), lambda n, h: (0, 0)),
            ],
            out_specs=pl.BlockSpec((1, C, 1), lambda n, h: (n, 0, 0)),
            scratch_shapes=[pltpu.VMEM((1, C), jnp.float32)],
        ),
        compiler_params=pltpu.CompilerParams(
            dimension_semantics=("parallel", "arbitrary"),
            vmem_limit_bytes=vmem_limit,
        ),
        cost_estimate=pl.CostEstimate(
            flops=int(N * C * HW + 4 * N * C * Bc),
            transcendentals=int(N * C),
            bytes_accessed=int(N * C * HW * itemsize + weight_bytes + N * C * 4),
        ),
    )(x_flat, w1f, b1f, w2f, b2f)

    # Pass 2: HW-tiled channel rescale.
    out = pl.pallas_call(
        _se_scale_kernel,
        out_shape=jax.ShapeDtypeStruct((N, C, HW), x.dtype),
        grid_spec=pltpu.PrefetchScalarGridSpec(
            num_scalar_prefetch=0,
            grid=(N, n_hw),
            in_specs=[
                pl.BlockSpec((1, C, hwt), lambda n, h: (n, 0, h)),
                pl.BlockSpec((1, C, 1), lambda n, h: (n, 0, 0)),
            ],
            out_specs=pl.BlockSpec((1, C, hwt), lambda n, h: (n, 0, h)),
        ),
        compiler_params=pltpu.CompilerParams(
            dimension_semantics=("parallel", "parallel"),
            vmem_limit_bytes=vmem_limit,
        ),
        cost_estimate=pl.CostEstimate(
            flops=int(N * C * HW),
            transcendentals=0,
            bytes_accessed=int(2 * N * C * HW * itemsize + N * C * 4),
        ),
    )(x_flat, gate)
    return out.reshape(N, C, H, W)


def _ref_se(x, w1, b1, w2, b2):
    y = x.mean((2, 3), keepdims=True)
    h = jnp.maximum(jnp.einsum("oc,nchw->nohw", w1, y) + b1[None, :, None, None], 0.0)
    s = jax.nn.sigmoid(jnp.einsum("co,nohw->nchw", w2, h) + b2[None, :, None, None])
    return x * s


if __name__ == "__main__":
    # SELayer(in_channels=4, bottleneck_channels=2) on a (2, 4, 16, 16) input.
    N, C, Bc, H, W = 2, 4, 2, 16, 16
    key = jax.random.PRNGKey(0)
    kx, k1, k2, k3, k4 = jax.random.split(key, 5)
    x = jax.random.normal(kx, (N, C, H, W), dtype=jnp.float32)
    w1 = jax.random.normal(k1, (Bc, C), dtype=jnp.float32) * 0.1     # Conv2d(C, Bc, 1)
    b1 = jax.random.normal(k2, (Bc,), dtype=jnp.float32) * 0.1
    w2 = jax.random.normal(k3, (C, Bc), dtype=jnp.float32) * 0.1     # Conv2d(Bc, C, 1)
    b2 = jax.random.normal(k4, (C,), dtype=jnp.float32) * 0.1

    out = jax.block_until_ready(jax.jit(se_layer)(x, w1, b1, w2, b2))
    ref = _ref_se(x, w1, b1, w2, b2)
    assert jnp.allclose(out, ref, atol=1e-5, rtol=1e-5), "single-pass mismatch"

    # Also exercise the two-pass (VMEM-constrained) fallback with a ragged HW
    # (20*20 = 400, tile 128 -> masked tail block) so that path is validated too.
    N2, C2, Bc2, H2, W2 = 3, 8, 4, 20, 20
    kx2, k5, k6, k7, k8 = jax.random.split(jax.random.PRNGKey(1), 5)
    x2 = jax.random.normal(kx2, (N2, C2, H2, W2), dtype=jnp.float32)
    w1b = jax.random.normal(k5, (Bc2, C2), dtype=jnp.float32) * 0.1
    b1b = jax.random.normal(k6, (Bc2,), dtype=jnp.float32) * 0.1
    w2b = jax.random.normal(k7, (C2, Bc2), dtype=jnp.float32) * 0.1
    b2b = jax.random.normal(k8, (C2,), dtype=jnp.float32) * 0.1
    two_pass_fn = jax.jit(functools.partial(se_layer, force_two_pass=True, hw_tile=128))
    out2 = jax.block_until_ready(two_pass_fn(x2, w1b, b1b, w2b, b2b))
    ref2 = _ref_se(x2, w1b, b1b, w2b, b2b)
    assert jnp.allclose(out2, ref2, atol=1e-5, rtol=1e-5), "two-pass mismatch"

    print("KERNEL_OK")
</pallas_src>

<mosaic_0001>
module attributes {stable_mosaic.version = 11 : i64} {
  func.func @_se_fused_kernel(%arg0: i32, %arg1: memref<1x4x256xf32, #tpu.memory_space<vmem>>, %arg2: memref<2x4xf32, #tpu.memory_space<vmem>>, %arg3: memref<1x2xf32, #tpu.memory_space<vmem>>, %arg4: memref<4x2xf32, #tpu.memory_space<vmem>>, %arg5: memref<1x4xf32, #tpu.memory_space<vmem>>, %arg6: memref<1x4x256xf32, #tpu.memory_space<vmem>>) attributes {dimension_semantics = [#tpu.dimension_semantics<parallel>], iteration_bounds = array<i64: 2>, scalar_prefetch = 0 : i64, scratch_operands = 0 : i64, tpu.core_type = #tpu.core_type<tc>, window_params = [{transform_indices = @transform_0, window_bounds = array<i64: 1, 4, 256>}, {pipeline_mode = #tpu.pipeline_mode<synchronous>, transform_indices = @transform_1, window_bounds = array<i64: 2, 4>}, {pipeline_mode = #tpu.pipeline_mode<synchronous>, transform_indices = @transform_2, window_bounds = array<i64: 1, 2>}, {pipeline_mode = #tpu.pipeline_mode<synchronous>, transform_indices = @transform_3, window_bounds = array<i64: 4, 2>}, {pipeline_mode = #tpu.pipeline_mode<synchronous>, transform_indices = @transform_4, window_bounds = array<i64: 1, 4>}, {transform_indices = @transform_5, window_bounds = array<i64: 1, 4, 256>}]} {
    %c0 = arith.constant 0 : index
    %c0_0 = arith.constant 0 : index
    %c0_1 = arith.constant 0 : index
    %0 = vector.load %arg1[%c0, %c0_0, %c0_1] : memref<1x4x256xf32, #tpu.memory_space<vmem>>, vector<1x4x256xf32>
    %cst = arith.constant dense<0.000000e+00> : vector<1x4xf32>
    %1 = vector.multi_reduction <add>, %0, %cst [2] : vector<1x4x256xf32> to vector<1x4xf32>
    %c0_2 = arith.constant 0 : index
    %c0_3 = arith.constant 0 : index
    %2 = vector.load %arg2[%c0_2, %c0_3] : memref<2x4xf32, #tpu.memory_space<vmem>>, vector<2x4xf32>
    %c0_4 = arith.constant 0 : index
    %c0_5 = arith.constant 0 : index
    %3 = vector.load %arg4[%c0_4, %c0_5] : memref<4x2xf32, #tpu.memory_space<vmem>>, vector<4x2xf32>
    %4 = vector.shape_cast %1 : vector<1x4xf32> to vector<1x1x4xf32>
    %5 = vector.shape_cast %2 : vector<2x4xf32> to vector<1x2x4xf32>
    %6 = vector.broadcast %4 : vector<1x1x4xf32> to vector<1x2x4xf32>
    %7 = arith.mulf %6, %5 : vector<1x2x4xf32>
    %cst_6 = arith.constant dense<0.000000e+00> : vector<1x2xf32>
    %8 = vector.multi_reduction <add>, %7, %cst_6 [2] : vector<1x2x4xf32> to vector<1x2xf32>
    %c0_7 = arith.constant 0 : index
    %c0_8 = arith.constant 0 : index
    %9 = vector.load %arg3[%c0_7, %c0_8] : memref<1x2xf32, #tpu.memory_space<vmem>>, vector<1x2xf32>
    %10 = arith.addf %8, %9 : vector<1x2xf32>
    %cst_9 = arith.constant 0.000000e+00 : f32
    %11 = vector.broadcast %cst_9 : f32 to vector<1x2xf32>
    %12 = arith.maximumf %10, %11 : vector<1x2xf32>
    %13 = vector.shape_cast %12 : vector<1x2xf32> to vector<1x1x2xf32>
    %14 = vector.shape_cast %3 : vector<4x2xf32> to vector<1x4x2xf32>
    %15 = vector.broadcast %13 : vector<1x1x2xf32> to vector<1x4x2xf32>
    %16 = arith.mulf %15, %14 : vector<1x4x2xf32>
    %cst_10 = arith.constant dense<0.000000e+00> : vector<1x4xf32>
    %17 = vector.multi_reduction <add>, %16, %cst_10 [2] : vector<1x4x2xf32> to vector<1x4xf32>
    %c0_11 = arith.constant 0 : index
    %c0_12 = arith.constant 0 : index
    %18 = vector.load %arg5[%c0_11, %c0_12] : memref<1x4xf32, #tpu.memory_space<vmem>>, vector<1x4xf32>
    %19 = arith.addf %17, %18 : vector<1x4xf32>
    %20 = arith.negf %19 : vector<1x4xf32>
    %21 = math.exp %20 : vector<1x4xf32>
    %cst_13 = arith.constant 1.000000e+00 : f32
    %22 = vector.broadcast %cst_13 : f32 to vector<1x4xf32>
    %23 = arith.addf %22, %21 : vector<1x4xf32>
    %24 = arith.divf %22, %23 : vector<1x4xf32>
    %c0_14 = arith.constant 0 : index
    %c0_15 = arith.constant 0 : index
    %c0_16 = arith.constant 0 : index
    %25 = vector.load %arg1[%c0_14, %c0_15, %c0_16] : memref<1x4x256xf32, #tpu.memory_space<vmem>>, vector<1x4x256xf32>
    %26 = vector.shape_cast %24 : vector<1x4xf32> to vector<1x4x1xf32>
    %27 = vector.broadcast %26 : vector<1x4x1xf32> to vector<1x4x256xf32>
    %28 = arith.mulf %25, %27 : vector<1x4x256xf32>
    %c0_17 = arith.constant 0 : index
    %c0_18 = arith.constant 0 : index
    %c0_19 = arith.constant 0 : index
    %29 = vector.load %arg6[%c0_17, %c0_18, %c0_19] : memref<1x4x256xf32, #tpu.memory_space<vmem>>, vector<1x4x256xf32>
    tpu.vector_store %arg6[%c0_17, %c0_18, %c0_19], %28 {strides = array<i32>} : memref<1x4x256xf32, #tpu.memory_space<vmem>>, vector<1x4x256xf32>,
    return
  }
  func.func @transform_0(%arg0: i32) -> (i32, i32, i32) {
    %c0_i32 = arith.constant 0 : i32
    %c0_i32_0 = arith.constant 0 : i32
    %c0_i32_1 = arith.constant 0 : i32
    return %arg0, %c0_i32, %c0_i32_0 : i32, i32, i32
  }
  func.func @transform_1(%arg0: i32) -> (i32, i32) {
    %c0_i32 = arith.constant 0 : i32
    %c0_i32_0 = arith.constant 0 : i32
    %c0_i32_1 = arith.constant 0 : i32
    return %c0_i32, %c0_i32_0 : i32, i32
  }
  func.func @transform_2(%arg0: i32) -> (i32, i32) {
    %c0_i32 = arith.constant 0 : i32
    %c0_i32_0 = arith.constant 0 : i32
    %c0_i32_1 = arith.constant 0 : i32
    return %c0_i32, %c0_i32_0 : i32, i32
  }
  func.func @transform_3(%arg0: i32) -> (i32, i32) {
    %c0_i32 = arith.constant 0 : i32
    %c0_i32_0 = arith.constant 0 : i32
    %c0_i32_1 = arith.constant 0 : i32
    return %c0_i32, %c0_i32_0 : i32, i32
  }
  func.func @transform_4(%arg0: i32) -> (i32, i32) {
    %c0_i32 = arith.constant 0 : i32
    %c0_i32_0 = arith.constant 0 : i32
    %c0_i32_1 = arith.constant 0 : i32
    return %c0_i32, %c0_i32_0 : i32, i32
  }
  func.func @transform_5(%arg0: i32) -> (i32, i32, i32) {
    %c0_i32 = arith.constant 0 : i32
    %c0_i32_0 = arith.constant 0 : i32
    %c0_i32_1 = arith.constant 0 : i32
    return %arg0, %c0_i32, %c0_i32_0 : i32, i32, i32
  }
}

</mosaic_0001>

<llo_original>
// kernel: se_layer.1
$region0: #{se_layer.1}
  #allocation0 [shape = 'u32[]', space=smem, size = 0x4, offset = 0x4, fixed_abs, tag = 'smem constant byte address 0x4 - core index']
  #allocation1 [shape = 'u32[72,128]{1,0:T(1,128)}', space=vmem, size = 0x9000, scoped, tag = 'internal scratch']
  %s0 = inlined_call_operand.vmem [shape: f32[2,4,256], index: 0, kind: input, shape index: {}]
  %s1 = inlined_call_operand.vmem [shape: f32[2,4], index: 1, kind: input, shape index: {}]
  %s2 = inlined_call_operand.vmem [shape: f32[1,2], index: 2, kind: input, shape index: {}]
  %s3 = inlined_call_operand.vmem [shape: f32[4,2], index: 3, kind: input, shape index: {}]
  %s4 = inlined_call_operand.vmem [shape: f32[1,4], index: 4, kind: input, shape index: {}]
  %s5 = inlined_call_operand.vmem [shape: f32[2,4,256], index: 5, kind: output, shape index: {}]
  %s6 = sld [smem:[#allocation0]]
  $region53: #{se_layer.1} parent=0
    _
  %s8 = ssub.s32 1, %s6
  %s9 = scalar_select 0, %s8, %s6
  loop: start=0, step=1, limit=4
  $region2: #{se_layer.1} parent=0 // loop_pre_header
    _
  $region3: #{se_layer.1} parent=0 // loop_header
    %s11 = sphi 0, %s15
    %p12 = scmp.ge.s32.totalorder %s11, 4
    %s21 = sphi 0, %s23
    %s24 = sphi 0, %s21
    %s25 = sphi 0, %s24
    %s41 = sphi 0, %s25
    %s45 = sphi 0, %s45
    %s47 = sphi 0, %s45
    %s48 = sphi 0, %s47
    %s62 = sphi 0, %s48
    %s66 = sphi 0, %s66
    %s68 = sphi 0, %s66
    %s69 = sphi 0, %s68
    %s83 = sphi 0, %s69
    %s87 = sphi 0, %s87
    %s89 = sphi 0, %s87
    %s90 = sphi 0, %s89
    %s104 = sphi 0, %s90
    %s108 = sphi 0, %s108
    %s110 = sphi 0, %s108
    %s111 = sphi 0, %s110
    %s125 = sphi 0, %s111
    %s131 = sphi 0, %s133
    %s134 = sphi 0, %s131
    %s135 = sphi 0, %s134
    %s151 = sphi 0, %s135
  $region4: #{se_layer.1} parent=0 // loop_header_branch
    %14 = sbr.rel (%p12) target = $region8
  $region5: #{se_layer.1} parent=0 // loop_body
    %s16 = ssub.s32 %s11, 1
    %s17 = ssub.s32 %s11, 2
    %s18 = sadd.s32 %s11, 1
    %s19 = ssub.s32 %s11, %s18
    %p20 = scmp.eq.s32.totalorder %s19, 0
    %s22 = sadd.s32 %s21, 1
    %s23 = scalar_select %p20, %s21, %s22
    %p26 = pneg %p20
    %p27 = scmp.eq.s32.totalorder %s11, 1
    %p28 = por %p26, %p27
    %p29 = scmp.ne.s32.totalorder %s21, %s24
    %p30 = scmp.eq.s32.totalorder %s11, 0
    %p31 = por %p29, %p30
    %p32 = scmp.ne.s32.totalorder %s21, %s24
    %p33 = scmp.eq.s32.totalorder %s16, 1
    %p34 = por %p32, %p33
    %p35 = scmp.ne.s32.totalorder %s24, %s25
    %p36 = scmp.eq.s32.totalorder %s16, 0
    %p37 = por %p35, %p36
    %p38 = scmp.ne.s32.totalorder %s24, %s25
    %p39 = scmp.eq.s32.totalorder %s17, 1
    %p40 = por %p38, %p39
    %p42 = scmp.ne.s32.totalorder %s25, %s41
    %p43 = scmp.eq.s32.totalorder %s17, 0
    %p44 = por %p42, %p43
    %s46 = sadd.s32 %s45, 1
    %p49 = scmp.eq.s32.totalorder %s11, 1
    %p50 = scmp.ne.s32.totalorder %s45, %s47
    %p51 = scmp.eq.s32.totalorder %s11, 0
    %p52 = por %p50, %p51
    %p53 = scmp.ne.s32.totalorder %s45, %s47
    %p54 = scmp.eq.s32.totalorder %s16, 1
    %p55 = por %p53, %p54
    %p56 = scmp.ne.s32.totalorder %s47, %s48
    %p57 = scmp.eq.s32.totalorder %s16, 0
    %p58 = por %p56, %p57
    %p59 = scmp.ne.s32.totalorder %s47, %s48
    %p60 = scmp.eq.s32.totalorder %s17, 1
    %p61 = por %p59, %p60
    %p63 = scmp.ne.s32.totalorder %s48, %s62
    %p64 = scmp.eq.s32.totalorder %s17, 0
    %p65 = por %p63, %p64
    %s67 = sadd.s32 %s66, 1
    %p70 = scmp.eq.s32.totalorder %s11, 1
    %p71 = scmp.ne.s32.totalorder %s66, %s68
    %p72 = scmp.eq.s32.totalorder %s11, 0
    %p73 = por %p71, %p72
    %p74 = scmp.ne.s32.totalorder %s66, %s68
    %p75 = scmp.eq.s32.totalorder %s16, 1
    %p76 = por %p74, %p75
    %p77 = scmp.ne.s32.totalorder %s68, %s69
    %p78 = scmp.eq.s32.totalorder %s16, 0
    %p79 = por %p77, %p78
    %p80 = scmp.ne.s32.totalorder %s68, %s69
    %p81 = scmp.eq.s32.totalorder %s17, 1
    %p82 = por %p80, %p81
    %p84 = scmp.ne.s32.totalorder %s69, %s83
    %p85 = scmp.eq.s32.totalorder %s17, 0
    %p86 = por %p84, %p85
    %s88 = sadd.s32 %s87, 1
    %p91 = scmp.eq.s32.totalorder %s11, 1
    %p92 = scmp.ne.s32.totalorder %s87, %s89
    %p93 = scmp.eq.s32.totalorder %s11, 0
    %p94 = por %p92, %p93
    %p95 = scmp.ne.s32.totalorder %s87, %s89
    %p96 = scmp.eq.s32.totalorder %s16, 1
    %p97 = por %p95, %p96
    %p98 = scmp.ne.s32.totalorder %s89, %s90
    %p99 = scmp.eq.s32.totalorder %s16, 0
    %p100 = por %p98, %p99
    %p101 = scmp.ne.s32.totalorder %s89, %s90
    %p102 = scmp.eq.s32.totalorder %s17, 1
    %p103 = por %p101, %p102
    %p105 = scmp.ne.s32.totalorder %s90, %s104
    %p106 = scmp.eq.s32.totalorder %s17, 0
    %p107 = por %p105, %p106
    %s109 = sadd.s32 %s108, 1
    %p112 = scmp.eq.s32.totalorder %s11, 1
    %p113 = scmp.ne.s32.totalorder %s108, %s110
    %p114 = scmp.eq.s32.totalorder %s11, 0
    %p115 = por %p113, %p114
    %p116 = scmp.ne.s32.totalorder %s108, %s110
    %p117 = scmp.eq.s32.totalorder %s16, 1
    %p118 = por %p116, %p117
    %p119 = scmp.ne.s32.totalorder %s110, %s111
    %p120 = scmp.eq.s32.totalorder %s16, 0
    %p121 = por %p119, %p120
    %p122 = scmp.ne.s32.totalorder %s110, %s111
    %p123 = scmp.eq.s32.totalorder %s17, 1
    %p124 = por %p122, %p123
    %p126 = scmp.ne.s32.totalorder %s111, %s125
    %p127 = scmp.eq.s32.totalorder %s17, 0
    %p128 = por %p126, %p127
    %s129 = ssub.s32 %s11, %s18
    %p130 = scmp.eq.s32.totalorder %s129, 0
    %s132 = sadd.s32 %s131, 1
    %s133 = scalar_select %p130, %s131, %s132
    %p136 = pneg %p130
    %p137 = scmp.eq.s32.totalorder %s11, 1
    %p138 = por %p136, %p137
    %p139 = scmp.ne.s32.totalorder %s131, %s134
    %p140 = scmp.eq.s32.totalorder %s11, 0
    %p141 = por %p139, %p140
    %p142 = scmp.ne.s32.totalorder %s131, %s134
    %p143 = scmp.eq.s32.totalorder %s16, 1
    %p144 = por %p142, %p143
    %p145 = scmp.ne.s32.totalorder %s134, %s135
    %p146 = scmp.eq.s32.totalorder %s16, 0
    %p147 = por %p145, %p146
    %p148 = scmp.ne.s32.totalorder %s134, %s135
    %p149 = scmp.eq.s32.totalorder %s17, 1
    %p150 = por %p148, %p149
    %p152 = scmp.ne.s32.totalorder %s135, %s151
    %p153 = scmp.eq.s32.totalorder %s17, 0
    %p154 = por %p152, %p153
    %p155 = scmp.le.s32.totalorder 1, %s11
    %p156 = scmp.lt.s32.totalorder %s11, 3
    %p157 = pnand %p155, %p156
    %p158 = pneg %p157
    // Predicated region
    $region9: #{se_layer.1} parent=5 // pred_check
      _
    $region10: #{se_layer.1} parent=5 // pred_check_branch
      %160 = sbr.rel (%p157) target = $region12
    $region11: #{se_layer.1} parent=5 // pred_region
      %s161 = ssub.s32 %s11, 1
      // Predicated region
      $region13: #{se_layer.1} parent=11 // pred_check
        %p162 = pneg %p58
      $region14: #{se_layer.1} parent=11 // pred_check_branch
        %164 = sbr.rel (%p162) target = $region16
      $region15: #{se_layer.1} parent=11 // pred_region
        _
      $region16: #{se_layer.1} parent=11 // pred_fallthru
        _
      // Predicated region
      $region17: #{se_layer.1} parent=11 // pred_check
        %p165 = pneg %p79
      $region18: #{se_layer.1} parent=11 // pred_check_branch
        %167 = sbr.rel (%p165) target = $region20
      $region19: #{se_layer.1} parent=11 // pred_region
        _
      $region20: #{se_layer.1} parent=11 // pred_fallthru
        _
      // Predicated region
      $region21: #{se_layer.1} parent=11 // pred_check
        %p168 = pneg %p100
      $region22: #{se_layer.1} parent=11 // pred_check_branch
        %170 = sbr.rel (%p168) target = $region24
      $region23: #{se_layer.1} parent=11 // pred_region
        _
      $region24: #{se_layer.1} parent=11 // pred_fallthru
        _
      // Predicated region
      $region25: #{se_layer.1} parent=11 // pred_check
        %p171 = pneg %p121
      $region26: #{se_layer.1} parent=11 // pred_check_branch
        %173 = sbr.rel (%p171) target = $region28
      $region27: #{se_layer.1} parent=11 // pred_region
        _
      $region28: #{se_layer.1} parent=11 // pred_fallthru
        _
    $region12: #{se_layer.1} parent=5 // pred_fallthru
      _
    %p174 = scmp.lt.s32.totalorder %s11, 2
    // Predicated region
    $region29: #{se_layer.1} parent=5 // pred_check
      %p175 = pneg %p174
    $region30: #{se_layer.1} parent=5 // pred_check_branch
      %177 = sbr.rel (%p175) target = $region32
    $region31: #{se_layer.1} parent=5 // pred_region
      // Predicated region
      $region33: #{se_layer.1} parent=31 // pred_check
        %p178 = pneg %p31
      $region34: #{se_layer.1} parent=31 // pred_check_branch
        %180 = sbr.rel (%p178) target = $region36
      $region35: #{se_layer.1} parent=31 // pred_region
        %p181 = scmp.lt.s32.totalorder %s11, 1
        %s182 = scalar_select %p181, %s11, 1
        %s183 = smul.addr %s182, 2
        %s184 = smul.addr %s183, 4
        %s185 = scalar_lea.vmem %s0, %s184
      $region36: #{se_layer.1} parent=31 // pred_fallthru
        _
    $region32: #{se_layer.1} parent=5 // pred_fallthru
      _
    %p186 = scmp.le.s32.totalorder 1, %s11
    %p187 = scmp.lt.s32.totalorder %s11, 3
    %p188 = pnand %p186, %p187
    %p189 = pneg %p188
    // Predicated region
    $region37: #{se_layer.1} parent=5 // pred_check
      _
    $region38: #{se_layer.1} parent=5 // pred_check_branch
      %191 = sbr.rel (%p188) target = $region40
    $region39: #{se_layer.1} parent=5 // pred_region
      %s192 = ssub.s32 %s11, 1
      %p193 = scmp.lt.s32.totalorder %s16, 1
      %s194 = scalar_select %p193, %s16, 1
      %s195 = smul.addr %s194, 2
      %s196 = smul.addr %s195, 4
      %s197 = scalar_lea.vmem %s0, %s196
      %p198 = pneg %p37
      %p199 = pneg %p34
      %p200 = pneg %p58
      %p201 = pneg %p55
      %p202 = pneg %p79
      %p203 = pneg %p76
      %p204 = pneg %p100
      %p205 = pneg %p97
      %p206 = pneg %p121
      %p207 = pneg %p118
      %p208 = pneg %p147
      %p209 = pneg %p144
      %p210 = scmp.lt.s32.totalorder %s16, 1
      %s211 = scalar_select %p210, %s16, 1
      %s212 = smul.addr %s211, 2
      %s213 = smul.addr %s212, 4
      %s214 = scalar_lea.vmem %s5, %s213
      %p215 = scmp.lt.s32.totalorder %s16, 1
      %s216 = scalar_select %p215, %s16, 1
      %s217 = smul.addr %s216, 2
      %s218 = smul.addr %s217, 4
      %s219 = scalar_lea.vmem %s0, %s218
      %p220 = scmp.lt.s32.totalorder %s16, 1
      %s221 = scalar_select %p220, %s16, 1
      %s222 = smul.addr %s221, 2
      %s223 = smul.addr %s222, 4
      %s224 = scalar_lea.vmem %s5, %s223
      %v225 = vld [vmem:[%s219] sm:$0xff]
      %227 = vst [vmem:[#allocation1] ss:$2 sm:$0xff] %v225
      %v228 = vld.sshfl [vmem:[#allocation1] sm:$0xff pattern:$0x75316420]
      %v229 = vld.sshfl [vmem:[#allocation1 + $0x8] sm:$0xff pattern:$0x75316420]
      %vm232 = vcmask 1043456
      %v233 = vsel %vm232, %v228, 0.0
      %v234 = vsel %vm232, %v229, 0.0
      %v235 = vadd.f32 %v233, %v234
      %236 = vadd.xlane.f32.xlu0 %v235
      %v237 = vpop.xlane.xlu0 %236
      %v238 = vld [vmem:[%s1] sm:$0x3]
      %v239 = vld [vmem:[%s3] sm:$0xf]
      %v241 = vperm.slane %v238, 0
      %v242 = vlaneseq
      %v243 = vshrl.u32 %v242, 7
      %245 = vset.pattern.permute.xlu0 %v243
      %246 = vperm.xlu0 %245, %v241
      %v247 = vpop.permute.xlu0 %246
      %v248 = vperm.slane %v238, 1
      %v249 = vlaneseq
      %v250 = vshrl.u32 %v249, 7
      %252 = vset.pattern.permute.xlu0 %v250
      %253 = vperm.xlu0 %252, %v248
      %v254 = vpop.permute.xlu0 %253
      %v257 = vmul.f32 %v237, %v247
      %v258 = vmul.f32 %v237, %v254
      %261 = vset.pattern.permute.xlu0 0
      %262 = vperm.xlu0 %261, %v257
      %v263 = vpop.permute.xlu0 %262
      %264 = vset.pattern.permute.xlu0 0
      %265 = vperm.xlu0 %264, %v258
      %v266 = vpop.permute.xlu0 %265
      %v267 = vlaneseq
      %v268 = vand.u32 %v267, 127
      %v269 = vperm.slane %v263, %v268
      %v270 = vperm.slane %v266, %v268
      %vm271 = vcmask 1041409
      %v272 = vsel %vm271, %v270, %v269
      %vm274 = vcmask 25600
      %v275 = vsel %vm274, %v272, 0.0
      %276 = vadd.xlane.f32.xlu0 %v275
      %v277 = vpop.xlane.xlu0 %276
      %v278 = vld [vmem:[%s2] sm:$0x1]
      %v280 = vperm.slane %v278, 0
      %v281 = vlaneseq
      %v282 = vshrl.u32 %v281, 7
      %284 = vset.pattern.permute.xlu0 %v282
      %285 = vperm.xlu0 %284, %v280
      %v286 = vpop.permute.xlu0 %285
      %v288 = vadd.f32 %v277, %v286
      %v289 = vmax.f32 %v288, 0.0
      %v291 = vperm.slane %v239, 0
      %v292 = vlaneseq
      %v293 = vshrl.u32 %v292, 7
      %295 = vset.pattern.permute.xlu0 %v293
      %296 = vperm.xlu0 %295, %v291
      %v297 = vpop.permute.xlu0 %296
      %v298 = vperm.slane %v239, 1
      %v299 = vlaneseq
      %v300 = vshrl.u32 %v299, 7
      %302 = vset.pattern.permute.xlu0 %v300
      %303 = vperm.xlu0 %302, %v298
      %v304 = vpop.permute.xlu0 %303
      %v305 = vperm.slane %v239, 2
      %v306 = vlaneseq
      %v307 = vshrl.u32 %v306, 7
      %309 = vset.pattern.permute.xlu0 %v307
      %310 = vperm.xlu0 %309, %v305
      %v311 = vpop.permute.xlu0 %310
      %v312 = vperm.slane %v239, 3
      %v313 = vlaneseq
      %v314 = vshrl.u32 %v313, 7
      %316 = vset.pattern.permute.xlu0 %v314
      %317 = vperm.xlu0 %316, %v312
      %v318 = vpop.permute.xlu0 %317
      %v323 = vmul.f32 %v289, %v297
      %v324 = vmul.f32 %v289, %v304
      %v325 = vmul.f32 %v289, %v311
      %v326 = vmul.f32 %v289, %v318
      %331 = vset.pattern.permute.xlu0 0
      %332 = vperm.xlu0 %331, %v323
      %v333 = vpop.permute.xlu0 %332
      %334 = vset.pattern.permute.xlu0 0
      %335 = vperm.xlu0 %334, %v324
      %v336 = vpop.permute.xlu0 %335
      %337 = vset.pattern.permute.xlu0 0
      %338 = vperm.xlu0 %337, %v325
      %v339 = vpop.permute.xlu0 %338
      %340 = vset.pattern.permute.xlu0 0
      %341 = vperm.xlu0 %340, %v326
      %v342 = vpop.permute.xlu0 %341
      %v343 = vperm.slane %v333, %v268
      %v344 = vperm.slane %v336, %v268
      %v345 = vperm.slane %v339, %v268
      %v346 = vperm.slane %v342, %v268
      %v347 = vsel %vm271, %v344, %v343
      %vm348 = vcmask 1042434
      %v349 = vsel %vm348, %v345, %v347
      %vm350 = vcmask 1043459
      %v351 = vsel %vm350, %v346, %v349
      %vm353 = vcmask 11264
      %v354 = vsel %vm353, %v351, 0.0
      %355 = vadd.xlane.f32.xlu0 %v354
      %v356 = vpop.xlane.xlu0 %355
      %v357 = vld [vmem:[%s4] sm:$0x1]
      %v359 = vperm.slane %v357, 0
      %v360 = vlaneseq
      %v361 = vshrl.u32 %v360, 7
      %363 = vset.pattern.permute.xlu0 %v361
      %364 = vperm.xlu0 %363, %v359
      %v365 = vpop.permute.xlu0 %364
      %v367 = vadd.f32 %v356, %v365
      %v368 = vxor.u32 %v367, 2147483648
      %v369 = vmul.f32 %v368, 1.442695
      %v370 = vpow.pop %v369
      %v371 = vadd.f32 %v370, 1.0
      %v372 = vrcp.pop %v371
      %v373 = vmul.f32 %v371, %v372
      %v374 = vsub.f32 1.0, %v373
      %v375 = vmul.f32 %v372, %v374
      %v376 = vadd.f32 %v372, %v375
      %vm377 = vweird.f32 %v371
      %vm378 = vweird.f32 %v372
      %vm379 = vmor %vm377, %vm378
      %v380 = vsel %vm379, %v372, %v376
      %v381 = vand.u32 2147483647, %v371
      %vm382 = vcmp.eq.f32.partialorder %v381, 8.507059e+37
      %v383 = vand.u32 %v371, 2147483648
      %v384 = vor.u32 1.1754944e-38, %v383
      %v385 = vsel %vm382, %v384, %v380
      %v386 = vmul.f32 1.0, %v385
      %388 = vset.pattern.permute.xlu0 0
      %389 = vperm.xlu0 %388, %v386
      %v390 = vpop.permute.xlu0 %389
      %v392 = vunpack.c.l.s4 839922192
      %v393 = vunpack.c.0.s8 %v392
      %v394 = vperm.slane %v390, %v393
      %v396 = vmul.f32 %v225, %v394
      %397 = vst [vmem:[%s224] sm:$0xff] %v396
      %p398 = scmp.lt.s32.totalorder %s16, 1
      %s399 = scalar_select %p398, %s16, 1
      %s400 = smul.addr %s399, 2
      %s401 = smul.addr %s400, 4
      %s402 = scalar_lea.vmem %s5, %s401
      // Predicated region
      $region41: #{se_layer.1} parent=39 // pred_check
        %p403 = pneg %p144
      $region42: #{se_layer.1} parent=39 // pred_check_branch
        %405 = sbr.rel (%p403) target = $region44
      $region43: #{se_layer.1} parent=39 // pred_region
        _
      $region44: #{se_layer.1} parent=39 // pred_fallthru
        _
    $region40: #{se_layer.1} parent=5 // pred_fallthru
      _
    %p406 = scmp.le.s32.totalorder 2, %s11
    // Predicated region
    $region45: #{se_layer.1} parent=5 // pred_check
      %p407 = pneg %p406
    $region46: #{se_layer.1} parent=5 // pred_check_branch
      %409 = sbr.rel (%p407) target = $region48
    $region47: #{se_layer.1} parent=5 // pred_region
      %s410 = ssub.s32 %s11, 2
      // Predicated region
      $region49: #{se_layer.1} parent=47 // pred_check
        %p411 = pneg %p150
      $region50: #{se_layer.1} parent=47 // pred_check_branch
        %413 = sbr.rel (%p411) target = $region52
      $region51: #{se_layer.1} parent=47 // pred_region
        %p414 = scmp.lt.s32.totalorder %s17, 1
        %s415 = scalar_select %p414, %s17, 1
        %s416 = smul.addr %s415, 2
        %s417 = smul.addr %s416, 4
        %s418 = scalar_lea.vmem %s5, %s417
      $region52: #{se_layer.1} parent=47 // pred_fallthru
        _
    $region48: #{se_layer.1} parent=5 // pred_fallthru
      _
  $region6: #{se_layer.1} parent=0 // loop_footer
    %s15 = sadd.s32 1, %s11
  $region7: #{se_layer.1} parent=0 // loop_footer_branch
    %10 = sbr.rel target = $region3
  $region8: #{se_layer.1} parent=0 // loop_exit
    _

</llo_original>
